<compile_context>
chip_gen: v7x
topology: tpu7x:2x2x1
jax: 0.10.0
libtpu: 0.0.40
codegen_flags: <defaults>
</compile_context>

<pallas_src>
import functools

import jax
import jax.numpy as jnp
import numpy as np
from jax import lax
from jax.experimental import pallas as pl
from jax.experimental.pallas import tpu as pltpu


def _round_up(x: int, m: int) -> int:
    return (x + m - 1) // m * m


def _hstu_attn_kernel(q_ref, k_ref, v_ref, o_ref, acc_ref, *,
                      alpha: float, inv_n: float, num_heads: int,
                      attention_dim: int, linear_dim: int,
                      tq_blk: int, tk_blk: int, is_causal: bool):
    """One (batch, q-tile, kv-tile) step; accumulates into acc_ref."""
    qi = pl.program_id(1)
    ki = pl.program_id(2)

    @pl.when(ki == 0)
    def _init():
        acc_ref[...] = jnp.zeros_like(acc_ref)

    def _compute():
        if is_causal:
            row = lax.broadcasted_iota(jnp.int32, (tq_blk, tk_blk), 0) + qi * tq_blk
            col = lax.broadcasted_iota(jnp.int32, (tq_blk, tk_blk), 1) + ki * tk_blk
            causal_mask = row >= col

        outs = []
        for h in range(num_heads):
            qk_sl = slice(h * attention_dim, (h + 1) * attention_dim)
            v_sl = slice(h * linear_dim, (h + 1) * linear_dim)
            qh = q_ref[0, :, qk_sl]                       # (tq, Dqk) input dtype
            kh = k_ref[0, :, qk_sl]                       # (tk, Dqk)
            vh = v_ref[0, :, v_sl]                        # (tk, Dv)

            # q @ k^T via "nt" contraction -- no explicit transpose on the XLU.
            s = lax.dot_general(qh, kh, (((1,), (1,)), ((), ())),
                                preferred_element_type=jnp.float32) * alpha
            a = s * jax.nn.sigmoid(s) * inv_n             # silu / N, f32
            if is_causal:
                a = jnp.where(causal_mask, a, 0.0)
            # Feed the MXU the input dtype (bf16 in production) with f32 acc.
            outs.append(jnp.dot(a.astype(vh.dtype), vh,
                                preferred_element_type=jnp.float32))

        # Single full-width (lane-dense) accumulate per kv step.
        acc_ref[...] += jnp.concatenate(outs, axis=-1)

    if is_causal:
        # Skip KV blocks that are entirely above the diagonal.
        needed = (ki * tk_blk) < ((qi + 1) * tq_blk)
        pl.when(needed)(_compute)
    else:
        _compute()

    @pl.when(ki == pl.num_programs(2) - 1)
    def _writeback():
        o_ref[0] = acc_ref[...].astype(o_ref.dtype)


def hstu_attention_forward(tq, tk, tv, offsets, max_seqlen, *,
                           num_heads, attention_dim, linear_dim, is_causal,
                           target_group_size=1, num_candidates=None,
                           num_contextuals=None, block_size=256):
    """JAX/Pallas equivalent of TritonHSTUAttention.forward."""
    if num_contextuals is None:
        num_contextuals = 0
    assert target_group_size == 1, "target_group_size != 1 not supported"
    assert isinstance(num_contextuals, int) and num_contextuals == 0  # TODO(synk)
    assert num_candidates is None  # TODO(synk)

    offsets = offsets.reshape(-1).astype(jnp.int32)        # (B+1,)
    T = tq.shape[0]
    B = offsets.shape[0] - 1
    H, Dqk, Dv = num_heads, attention_dim, linear_dim
    alpha = 1.0 / (attention_dim ** 0.5)
    inv_n = 1.0 / float(max_seqlen)

    # Tile sizes: multiples of 8 on the sublane axis; 256 default keeps the
    # double-buffered blocks well inside v7x's 64 MiB / v5e's scoped VMEM.
    Npad = _round_up(int(max_seqlen), 8)
    tq_blk = min(int(block_size), Npad)
    Npad = _round_up(Npad, tq_blk)
    tk_blk = tq_blk

    # Jagged -> dense (B, Npad, H*D), head-packed, no transposes.
    t_idx = jnp.arange(T, dtype=jnp.int32)
    seq_id = jnp.searchsorted(offsets, t_idx, side="right") - 1   # (T,)
    pos = t_idx - offsets[seq_id]                                  # (T,)

    def to_dense(x):
        dense = jnp.zeros((B, Npad, x.shape[-1]), x.dtype)
        return dense.at[seq_id, pos].set(x)

    qd, kd, vd = to_dense(tq), to_dense(tk), to_dense(tv)

    kernel = functools.partial(
        _hstu_attn_kernel, alpha=alpha, inv_n=inv_n, num_heads=H,
        attention_dim=Dqk, linear_dim=Dv, tq_blk=tq_blk, tk_blk=tk_blk,
        is_causal=is_causal)

    grid = (B, Npad // tq_blk, Npad // tk_blk)

    grid_spec = pltpu.PrefetchScalarGridSpec(
        num_scalar_prefetch=0,
        grid=grid,
        in_specs=[
            pl.BlockSpec((1, tq_blk, H * Dqk), lambda b, qi, ki: (b, qi, 0)),
            pl.BlockSpec((1, tk_blk, H * Dqk), lambda b, qi, ki: (b, ki, 0)),
            pl.BlockSpec((1, tk_blk, H * Dv), lambda b, qi, ki: (b, ki, 0)),
        ],
        out_specs=pl.BlockSpec((1, tq_blk, H * Dv), lambda b, qi, ki: (b, qi, 0)),
        scratch_shapes=[pltpu.VMEM((tq_blk, H * Dv), jnp.float32)],
    )

    itemsize = jnp.dtype(tq.dtype).itemsize
    blk_bytes = ((tq_blk + tk_blk) * H * Dqk + (tq_blk + tk_blk) * H * Dv) * itemsize
    vmem_limit = int(min(100 << 20,
                         max(32 << 20,
                             4 * blk_bytes + tq_blk * H * Dv * 4 + (8 << 20))))

    flops = 2 * B * H * Npad * Npad * (Dqk + Dv)
    if is_causal:
        flops //= 2
    cost = pl.CostEstimate(
        flops=flops,
        transcendentals=B * H * Npad * Npad,
        bytes_accessed=int((qd.size + kd.size + vd.size) * itemsize
                           + B * Npad * H * Dv * itemsize))

    out_dense = pl.pallas_call(
        kernel,
        out_shape=jax.ShapeDtypeStruct((B, Npad, H * Dv), tq.dtype),
        grid_spec=grid_spec,
        compiler_params=pltpu.CompilerParams(
            dimension_semantics=("parallel", "parallel", "arbitrary"),
            vmem_limit_bytes=vmem_limit),
        cost_estimate=cost,
    )(qd, kd, vd)                                          # (B, Npad, H*Dv)

    return out_dense[seq_id, pos]                          # (T, H*Dv)


def _reference(tq, tk, tv, offsets, max_seqlen, num_heads, attention_dim,
               linear_dim, is_causal):
    """Pure-JAX reference of the same semantics (python loop over batch)."""
    offsets = np.asarray(offsets).reshape(-1)
    alpha = 1.0 / (attention_dim ** 0.5)
    outs = []
    for b in range(offsets.shape[0] - 1):
        s, e = int(offsets[b]), int(offsets[b + 1])
        L = e - s
        q = tq[s:e].reshape(L, num_heads, attention_dim).transpose(1, 0, 2)
        k = tk[s:e].reshape(L, num_heads, attention_dim).transpose(1, 0, 2)
        v = tv[s:e].reshape(L, num_heads, linear_dim).transpose(1, 0, 2)
        scores = jnp.einsum("hid,hjd->hij", q, k) * alpha
        attn = scores * jax.nn.sigmoid(scores) / max_seqlen
        if is_causal:
            mask = jnp.tril(jnp.ones((L, L), bool))
            attn = jnp.where(mask[None], attn, 0.0)
        o = jnp.einsum("hij,hjd->hid", attn, v).transpose(1, 0, 2)
        outs.append(o.reshape(L, num_heads * linear_dim))
    return jnp.concatenate(outs, axis=0)


if __name__ == "__main__":
    num_heads, attention_dim, linear_dim = 2, 32, 32
    key = jax.random.PRNGKey(0)

    # --- Test 1: single-tile path (B=2, lengths 6 and 8, max_seqlen=8). ---
    max_seqlen = 8
    offsets = jnp.array([0, 6, 14], dtype=jnp.int32)
    T = int(offsets[-1])
    kq, kk, kv = jax.random.split(key, 3)
    tq = jax.random.normal(kq, (T, num_heads * attention_dim), jnp.float32)
    tk = jax.random.normal(kk, (T, num_heads * attention_dim), jnp.float32)
    tv = jax.random.normal(kv, (T, num_heads * linear_dim), jnp.float32)

    out = hstu_attention_forward(
        tq, tk, tv, offsets, max_seqlen,
        num_heads=num_heads, attention_dim=attention_dim,
        linear_dim=linear_dim, is_causal=True)
    out = jax.block_until_ready(out)
    ref = _reference(tq, tk, tv, offsets, max_seqlen, num_heads,
                     attention_dim, linear_dim, True)
    np.testing.assert_allclose(np.asarray(out), np.asarray(ref),
                               rtol=1e-4, atol=1e-4)

    # --- Test 2: multi-tile path (3 q-tiles x 3 kv-tiles, causal skip). ---
    max_seqlen2 = 24
    offsets2 = jnp.array([0, 20, 44, 57], dtype=jnp.int32)
    T2 = int(offsets2[-1])
    kq2, kk2, kv2 = jax.random.split(jax.random.PRNGKey(1), 3)
    tq2 = jax.random.normal(kq2, (T2, num_heads * attention_dim), jnp.float32)
    tk2 = jax.random.normal(kk2, (T2, num_heads * attention_dim), jnp.float32)
    tv2 = jax.random.normal(kv2, (T2, num_heads * linear_dim), jnp.float32)

    for causal in (True, False):
        out2 = hstu_attention_forward(
            tq2, tk2, tv2, offsets2, max_seqlen2,
            num_heads=num_heads, attention_dim=attention_dim,
            linear_dim=linear_dim, is_causal=causal, block_size=8)
        out2 = jax.block_until_ready(out2)
        ref2 = _reference(tq2, tk2, tv2, offsets2, max_seqlen2, num_heads,
                          attention_dim, linear_dim, causal)
        np.testing.assert_allclose(np.asarray(out2), np.asarray(ref2),
                                   rtol=1e-4, atol=1e-4)

    print("KERNEL_OK")
</pallas_src>

<mosaic_0001>
module attributes {stable_mosaic.version = 11 : i64} {
  func.func @_hstu_attn_kernel(%arg0: i32, %arg1: i32, %arg2: i32, %arg3: memref<1x8x64xf32, #tpu.memory_space<vmem>>, %arg4: memref<1x8x64xf32, #tpu.memory_space<vmem>>, %arg5: memref<1x8x64xf32, #tpu.memory_space<vmem>>, %arg6: memref<1x8x64xf32, #tpu.memory_space<vmem>>, %arg7: memref<8x64xf32, #tpu.memory_space<vmem>>) attributes {dimension_semantics = [#tpu.dimension_semantics<parallel>, #tpu.dimension_semantics<parallel>, #tpu.dimension_semantics<arbitrary>], iteration_bounds = array<i64: 2, 1, 1>, scalar_prefetch = 0 : i64, scratch_operands = 1 : i64, tpu.core_type = #tpu.core_type<tc>, window_params = [{transform_indices = @transform_0, window_bounds = array<i64: 1, 8, 64>}, {transform_indices = @transform_1, window_bounds = array<i64: 1, 8, 64>}, {transform_indices = @transform_2, window_bounds = array<i64: 1, 8, 64>}, {transform_indices = @transform_3, window_bounds = array<i64: 1, 8, 64>}]} {
    %c0_i32 = arith.constant 0 : i32
    %0 = arith.cmpi eq, %arg2, %c0_i32 : i32
    %1 = arith.extui %0 : i1 to i32
    %c0_i32_0 = arith.constant 0 : i32
    %2 = arith.cmpi ne, %1, %c0_i32_0 : i32
    scf.if %2 {
      %cst = arith.constant 0.000000e+00 : f32
      %12 = vector.broadcast %cst : f32 to vector<8x64xf32>
      %c0 = arith.constant 0 : index
      %c0_5 = arith.constant 0 : index
      %13 = vector.load %arg7[%c0, %c0_5] : memref<8x64xf32, #tpu.memory_space<vmem>>, vector<8x64xf32>
      tpu.vector_store %arg7[%c0, %c0_5], %12 {strides = array<i32>} : memref<8x64xf32, #tpu.memory_space<vmem>>, vector<8x64xf32>,
    } else {
    }
    %c8_i32 = arith.constant 8 : i32
    %3 = arith.muli %arg2, %c8_i32 : i32
    %c1_i32 = arith.constant 1 : i32
    %4 = arith.addi %arg1, %c1_i32 : i32
    %c8_i32_1 = arith.constant 8 : i32
    %5 = arith.muli %4, %c8_i32_1 : i32
    %6 = arith.cmpi slt, %3, %5 : i32
    %7 = arith.extui %6 : i1 to i32
    %c0_i32_2 = arith.constant 0 : i32
    %8 = arith.cmpi ne, %7, %c0_i32_2 : i32
    scf.if %8 {
      %12 = tpu.iota {dimensions = array<i32: 0>} : vector<8x8xi32>
      %c8_i32_5 = arith.constant 8 : i32
      %13 = arith.muli %arg1, %c8_i32_5 : i32
      %14 = vector.broadcast %13 : i32 to vector<8x8xi32>
      %15 = arith.addi %12, %14 : vector<8x8xi32>
      %16 = tpu.iota {dimensions = array<i32: 1>} : vector<8x8xi32>
      %c8_i32_6 = arith.constant 8 : i32
      %17 = arith.muli %arg2, %c8_i32_6 : i32
      %18 = vector.broadcast %17 : i32 to vector<8x8xi32>
      %19 = arith.addi %16, %18 : vector<8x8xi32>
      %20 = arith.cmpi sge, %15, %19 : vector<8x8xi32>
      %c0 = arith.constant 0 : index
      %c0_7 = arith.constant 0 : index
      %c0_8 = arith.constant 0 : index
      %21 = vector.load %arg3[%c0, %c0_7, %c0_8] : memref<1x8x64xf32, #tpu.memory_space<vmem>>, vector<1x8x32xf32>
      %22 = vector.shape_cast %21 : vector<1x8x32xf32> to vector<8x32xf32>
      %c0_9 = arith.constant 0 : index
      %c0_10 = arith.constant 0 : index
      %c0_11 = arith.constant 0 : index
      %23 = vector.load %arg4[%c0_9, %c0_10, %c0_11] : memref<1x8x64xf32, #tpu.memory_space<vmem>>, vector<1x8x32xf32>
      %24 = vector.shape_cast %23 : vector<1x8x32xf32> to vector<8x32xf32>
      %c0_12 = arith.constant 0 : index
      %c0_13 = arith.constant 0 : index
      %c0_14 = arith.constant 0 : index
      %25 = vector.load %arg5[%c0_12, %c0_13, %c0_14] : memref<1x8x64xf32, #tpu.memory_space<vmem>>, vector<1x8x32xf32>
      %26 = vector.shape_cast %25 : vector<1x8x32xf32> to vector<8x32xf32>
      %cst = arith.constant dense<0.000000e+00> : vector<8x8xf32>
      %27 = tpu.matmul %22, %24, %cst {dimension_numbers = #tpu.dot_dimension_numbers<[1], [1], [0], [0], [0, 0, 1, 0], [], []>} : vector<8x32xf32>, vector<8x32xf32>, vector<8x8xf32> -> vector<8x8xf32>
      %cst_15 = arith.constant 0.176776692 : f32
      %28 = vector.broadcast %cst_15 : f32 to vector<8x8xf32>
      %29 = arith.mulf %27, %28 : vector<8x8xf32>
      %30 = arith.negf %29 : vector<8x8xf32>
      %31 = math.exp %30 : vector<8x8xf32>
      %cst_16 = arith.constant 1.000000e+00 : f32
      %32 = vector.broadcast %cst_16 : f32 to vector<8x8xf32>
      %33 = arith.addf %32, %31 : vector<8x8xf32>
      %34 = arith.divf %32, %33 : vector<8x8xf32>
      %35 = arith.mulf %29, %34 : vector<8x8xf32>
      %cst_17 = arith.constant 1.250000e-01 : f32
      %36 = vector.broadcast %cst_17 : f32 to vector<8x8xf32>
      %37 = arith.mulf %35, %36 : vector<8x8xf32>
      %cst_18 = arith.constant 0.000000e+00 : f32
      %38 = vector.broadcast %cst_18 : f32 to vector<8x8xf32>
      %39 = arith.select %20, %37, %38 : vector<8x8xi1>, vector<8x8xf32>
      %cst_19 = arith.constant dense<0.000000e+00> : vector<8x32xf32>
      %40 = tpu.matmul %39, %26, %cst_19 {dimension_numbers = #tpu.dot_dimension_numbers<[1], [0], [0], [1], [0, 0, 1, 1], [], []>} : vector<8x8xf32>, vector<8x32xf32>, vector<8x32xf32> -> vector<8x32xf32>
      %c0_20 = arith.constant 0 : index
      %c0_21 = arith.constant 0 : index
      %c32 = arith.constant 32 : index
      %41 = vector.load %arg3[%c0_20, %c0_21, %c32] : memref<1x8x64xf32, #tpu.memory_space<vmem>>, vector<1x8x32xf32>
      %42 = vector.shape_cast %41 : vector<1x8x32xf32> to vector<8x32xf32>
      %c0_22 = arith.constant 0 : index
      %c0_23 = arith.constant 0 : index
      %c32_24 = arith.constant 32 : index
      %43 = vector.load %arg4[%c0_22, %c0_23, %c32_24] : memref<1x8x64xf32, #tpu.memory_space<vmem>>, vector<1x8x32xf32>
      %44 = vector.shape_cast %43 : vector<1x8x32xf32> to vector<8x32xf32>
      %c0_25 = arith.constant 0 : index
      %c0_26 = arith.constant 0 : index
      %c32_27 = arith.constant 32 : index
      %45 = vector.load %arg5[%c0_25, %c0_26, %c32_27] : memref<1x8x64xf32, #tpu.memory_space<vmem>>, vector<1x8x32xf32>
      %46 = vector.shape_cast %45 : vector<1x8x32xf32> to vector<8x32xf32>
      %cst_28 = arith.constant dense<0.000000e+00> : vector<8x8xf32>
      %47 = tpu.matmul %42, %44, %cst_28 {dimension_numbers = #tpu.dot_dimension_numbers<[1], [1], [0], [0], [0, 0, 1, 0], [], []>} : vector<8x32xf32>, vector<8x32xf32>, vector<8x8xf32> -> vector<8x8xf32>
      %cst_29 = arith.constant 0.176776692 : f32
      %48 = vector.broadcast %cst_29 : f32 to vector<8x8xf32>
      %49 = arith.mulf %47, %48 : vector<8x8xf32>
      %50 = arith.negf %49 : vector<8x8xf32>
      %51 = math.exp %50 : vector<8x8xf32>
      %cst_30 = arith.constant 1.000000e+00 : f32
      %52 = vector.broadcast %cst_30 : f32 to vector<8x8xf32>
      %53 = arith.addf %52, %51 : vector<8x8xf32>
      %54 = arith.divf %52, %53 : vector<8x8xf32>
      %55 = arith.mulf %49, %54 : vector<8x8xf32>
      %cst_31 = arith.constant 1.250000e-01 : f32
      %56 = vector.broadcast %cst_31 : f32 to vector<8x8xf32>
      %57 = arith.mulf %55, %56 : vector<8x8xf32>
      %cst_32 = arith.constant 0.000000e+00 : f32
      %58 = vector.broadcast %cst_32 : f32 to vector<8x8xf32>
      %59 = arith.select %20, %57, %58 : vector<8x8xi1>, vector<8x8xf32>
      %cst_33 = arith.constant dense<0.000000e+00> : vector<8x32xf32>
      %60 = tpu.matmul %59, %46, %cst_33 {dimension_numbers = #tpu.dot_dimension_numbers<[1], [0], [0], [1], [0, 0, 1, 1], [], []>} : vector<8x8xf32>, vector<8x32xf32>, vector<8x32xf32> -> vector<8x32xf32>
      %c0_34 = arith.constant 0 : index
      %c0_35 = arith.constant 0 : index
      %61 = vector.load %arg7[%c0_34, %c0_35] : memref<8x64xf32, #tpu.memory_space<vmem>>, vector<8x64xf32>
      %62 = tpu.concatenate %40, %60 in 1 : vector<8x32xf32>, vector<8x32xf32> -> vector<8x64xf32>
      %63 = arith.addf %61, %62 : vector<8x64xf32>
      %c0_36 = arith.constant 0 : index
      %c0_37 = arith.constant 0 : index
      %64 = vector.load %arg7[%c0_36, %c0_37] : memref<8x64xf32, #tpu.memory_space<vmem>>, vector<8x64xf32>
      tpu.vector_store %arg7[%c0_36, %c0_37], %63 {strides = array<i32>} : memref<8x64xf32, #tpu.memory_space<vmem>>, vector<8x64xf32>,
    } else {
    }
    %c0_i32_3 = arith.constant 0 : i32
    %9 = arith.cmpi eq, %arg2, %c0_i32_3 : i32
    %10 = arith.extui %9 : i1 to i32
    %c0_i32_4 = arith.constant 0 : i32
    %11 = arith.cmpi ne, %10, %c0_i32_4 : i32
    scf.if %11 {
      %c0 = arith.constant 0 : index
      %c0_5 = arith.constant 0 : index
      %12 = vector.load %arg7[%c0, %c0_5] : memref<8x64xf32, #tpu.memory_space<vmem>>, vector<8x64xf32>
      %c0_6 = arith.constant 0 : index
      %c0_7 = arith.constant 0 : index
      %c0_8 = arith.constant 0 : index
      %13 = vector.load %arg6[%c0_6, %c0_7, %c0_8] : memref<1x8x64xf32, #tpu.memory_space<vmem>>, vector<1x8x64xf32>
      %14 = vector.shape_cast %13 : vector<1x8x64xf32> to vector<8x64xf32>
      %15 = vector.shape_cast %12 : vector<8x64xf32> to vector<1x8x64xf32>
      tpu.vector_store %arg6[%c0_6, %c0_7, %c0_8], %15 {strides = array<i32>} : memref<1x8x64xf32, #tpu.memory_space<vmem>>, vector<1x8x64xf32>,
    } else {
    }
    return
  }
  func.func @transform_0(%arg0: i32, %arg1: i32, %arg2: i32) -> (i32, i32, i32) {
    %c0_i32 = arith.constant 0 : i32
    %c0_i32_0 = arith.constant 0 : i32
    return %arg0, %arg1, %c0_i32 : i32, i32, i32
  }
  func.func @transform_1(%arg0: i32, %arg1: i32, %arg2: i32) -> (i32, i32, i32) {
    %c0_i32 = arith.constant 0 : i32
    %c0_i32_0 = arith.constant 0 : i32
    return %arg0, %arg2, %c0_i32 : i32, i32, i32
  }
  func.func @transform_2(%arg0: i32, %arg1: i32, %arg2: i32) -> (i32, i32, i32) {
    %c0_i32 = arith.constant 0 : i32
    %c0_i32_0 = arith.constant 0 : i32
    return %arg0, %arg2, %c0_i32 : i32, i32, i32
  }
  func.func @transform_3(%arg0: i32, %arg1: i32, %arg2: i32) -> (i32, i32, i32) {
    %c0_i32 = arith.constant 0 : i32
    %c0_i32_0 = arith.constant 0 : i32
    return %arg0, %arg1, %c0_i32 : i32, i32, i32
  }
}

</mosaic_0001>

<llo_original>
// kernel: tpu_custom_call.1
$region0: #{tpu_custom_call.1}
  #allocation0 [shape = 'u32[]', space=smem, size = 0x4, offset = 0x4, fixed_abs, tag = 'smem constant byte address 0x4 - core index']
  #allocation1 [shape = 'u32[144,128]{1,0:T(1,128)}', space=vmem, size = 0x12000, scoped, tag = 'internal scratch']
  #allocation2 [shape = 'f32[8,64]{1,0:T(8,128)}', space=vmem, size = 0x1000, scoped, tag = 'scratch operand']
  %s0 = inlined_call_operand.hbm [shape: f32[2,8,64], index: 0, kind: input, shape index: {}]
  %s1 = inlined_call_operand.hbm [shape: f32[2,8,64], index: 1, kind: input, shape index: {}]
  %s2 = inlined_call_operand.hbm [shape: f32[2,8,64], index: 2, kind: input, shape index: {}]
  %s3 = inlined_call_operand.hbm [shape: f32[2,8,64], index: 3, kind: output, shape index: {}]
  %s4 = sld [smem:[#allocation0]]
  $region69: #{tpu_custom_call.1} parent=0
    _
  %s6 = ssub.s32 1, %s4
  %s7 = scalar_select 0, %s6, %s4
  $region1: #{tpu_custom_call.1} parent=0
    #allocation3 [shape = 'u8[8192]{0}', space=vmem, size = 0x2000, scoped, tag = 'input window, operand 0']
    #allocation4 [shape = 's32[2]{0}', space=sflag, size = 0x8, scoped, tag = 'scoped memory for tpu_custom_call.1']
    #allocation5 [shape = 's32[2]{0}', space=sflag, size = 0x8, scoped, tag = 'scoped memory for tpu_custom_call.1']
    #allocation6 [shape = 'u8[8192]{0}', space=vmem, size = 0x2000, scoped, tag = 'input window, operand 1']
    #allocation7 [shape = 's32[2]{0}', space=sflag, size = 0x8, scoped, tag = 'scoped memory for tpu_custom_call.1']
    #allocation8 [shape = 'u8[8192]{0}', space=vmem, size = 0x2000, scoped, tag = 'input window, operand 2']
    #allocation9 [shape = 'u8[8192]{0}', space=vmem, size = 0x2000, scoped, tag = 'output window, operand 0']
    %8 = vsyncpa [#allocation4], 0
    %s9 = scalar_lea.sflag [#allocation4], 1
    %10 = vsyncpa %s9, 0
    %11 = vsyncpa [#allocation7], 0
    %s12 = scalar_lea.sflag [#allocation7], 1
    %13 = vsyncpa %s12, 0
    %14 = vsyncpa [#allocation5], 0
    %s15 = scalar_lea.sflag [#allocation5], 1
    %16 = vsyncpa %s15, 0
    loop: start=0, step=1, limit=4
    $region2: #{tpu_custom_call.1} parent=1 // loop_pre_header
      _
    $region3: #{tpu_custom_call.1} parent=1 // loop_header
      %s18 = sphi 0, %s22
      %p19 = scmp.ge.s32.totalorder %s18, 4
      %s25 = sphi 0, %s44
      %s26 = sphi 0, %s40
      %s27 = sphi 0, %s36
      %s28 = sphi 0, %s25
      %s29 = sphi 0, %s26
      %s30 = sphi 0, %s27
      %s31 = sphi 0, %s28
      %s32 = sphi 0, %s29
      %s33 = sphi 0, %s30
      %s49 = sphi 0, %s51
      %s52 = sphi 0, %s49
      %s53 = sphi 0, %s52
      %s69 = sphi 0, %s53
      %s77 = sphi 0, %s79
      %s80 = sphi 0, %s77
      %s81 = sphi 0, %s80
      %s97 = sphi 0, %s81
      %s105 = sphi 0, %s107
      %s108 = sphi 0, %s105
      %s109 = sphi 0, %s108
      %s125 = sphi 0, %s109
      %s133 = sphi 0, %s135
      %s136 = sphi 0, %s133
      %s137 = sphi 0, %s136
      %s153 = sphi 0, %s137
    $region4: #{tpu_custom_call.1} parent=1 // loop_header_branch
      %21 = sbr.rel (%p19) target = $region8
    $region5: #{tpu_custom_call.1} parent=1 // loop_body
      %s23 = ssub.s32 %s18, 1
      %s24 = ssub.s32 %s18, 2
      %s34 = sadd.s32 1, %s27
      %p35 = scmp.ge.s32.totalorder %s34, 1
      %s36 = scalar_select %p35, 0, %s34
      %s37 = sadd.s32 1, %s26
      %s38 = scalar_select %p35, %s37, %s26
      %p39 = scmp.ge.s32.totalorder %s38, 1
      %s40 = scalar_select %p39, 0, %s38
      %s41 = sadd.s32 1, %s25
      %s42 = scalar_select %p39, %s41, %s25
      %p43 = scmp.ge.s32.totalorder %s42, 2
      %s44 = scalar_select %p43, 0, %s42
      %s45 = ssub.s32 %s25, %s44
      %s46 = ssub.s32 %s26, %s40
      %s47 = sor.u32 %s45, %s46
      %p48 = scmp.eq.s32.totalorder %s47, 0
      %s50 = sadd.s32 %s49, 1
      %s51 = scalar_select %p48, %s49, %s50
      %p54 = pneg %p48
      %p55 = scmp.eq.s32.totalorder %s18, 1
      %p56 = por %p54, %p55
      %p57 = scmp.ne.s32.totalorder %s49, %s52
      %p58 = scmp.eq.s32.totalorder %s18, 0
      %p59 = por %p57, %p58
      %p60 = scmp.ne.s32.totalorder %s49, %s52
      %p61 = scmp.eq.s32.totalorder %s23, 1
      %p62 = por %p60, %p61
      %p63 = scmp.ne.s32.totalorder %s52, %s53
      %p64 = scmp.eq.s32.totalorder %s23, 0
      %p65 = por %p63, %p64
      %p66 = scmp.ne.s32.totalorder %s52, %s53
      %p67 = scmp.eq.s32.totalorder %s24, 1
      %p68 = por %p66, %p67
      %p70 = scmp.ne.s32.totalorder %s53, %s69
      %p71 = scmp.eq.s32.totalorder %s24, 0
      %p72 = por %p70, %p71
      %s73 = ssub.s32 %s25, %s44
      %s74 = ssub.s32 %s27, %s36
      %s75 = sor.u32 %s73, %s74
      %p76 = scmp.eq.s32.totalorder %s75, 0
      %s78 = sadd.s32 %s77, 1
      %s79 = scalar_select %p76, %s77, %s78
      %p82 = pneg %p76
      %p83 = scmp.eq.s32.totalorder %s18, 1
      %p84 = por %p82, %p83
      %p85 = scmp.ne.s32.totalorder %s77, %s80
      %p86 = scmp.eq.s32.totalorder %s18, 0
      %p87 = por %p85, %p86
      %p88 = scmp.ne.s32.totalorder %s77, %s80
      %p89 = scmp.eq.s32.totalorder %s23, 1
      %p90 = por %p88, %p89
      %p91 = scmp.ne.s32.totalorder %s80, %s81
      %p92 = scmp.eq.s32.totalorder %s23, 0
      %p93 = por %p91, %p92
      %p94 = scmp.ne.s32.totalorder %s80, %s81
      %p95 = scmp.eq.s32.totalorder %s24, 1
      %p96 = por %p94, %p95
      %p98 = scmp.ne.s32.totalorder %s81, %s97
      %p99 = scmp.eq.s32.totalorder %s24, 0
      %p100 = por %p98, %p99
      %s101 = ssub.s32 %s25, %s44
      %s102 = ssub.s32 %s27, %s36
      %s103 = sor.u32 %s101, %s102
      %p104 = scmp.eq.s32.totalorder %s103, 0
      %s106 = sadd.s32 %s105, 1
      %s107 = scalar_select %p104, %s105, %s106
      %p110 = pneg %p104
      %p111 = scmp.eq.s32.totalorder %s18, 1
      %p112 = por %p110, %p111
      %p113 = scmp.ne.s32.totalorder %s105, %s108
      %p114 = scmp.eq.s32.totalorder %s18, 0
      %p115 = por %p113, %p114
      %p116 = scmp.ne.s32.totalorder %s105, %s108
      %p117 = scmp.eq.s32.totalorder %s23, 1
      %p118 = por %p116, %p117
      %p119 = scmp.ne.s32.totalorder %s108, %s109
      %p120 = scmp.eq.s32.totalorder %s23, 0
      %p121 = por %p119, %p120
      %p122 = scmp.ne.s32.totalorder %s108, %s109
      %p123 = scmp.eq.s32.totalorder %s24, 1
      %p124 = por %p122, %p123
      %p126 = scmp.ne.s32.totalorder %s109, %s125
      %p127 = scmp.eq.s32.totalorder %s24, 0
      %p128 = por %p126, %p127
      %s129 = ssub.s32 %s25, %s44
      %s130 = ssub.s32 %s26, %s40
      %s131 = sor.u32 %s129, %s130
      %p132 = scmp.eq.s32.totalorder %s131, 0
      %s134 = sadd.s32 %s133, 1
      %s135 = scalar_select %p132, %s133, %s134
      %p138 = pneg %p132
      %p139 = scmp.eq.s32.totalorder %s18, 1
      %p140 = por %p138, %p139
      %p141 = scmp.ne.s32.totalorder %s133, %s136
      %p142 = scmp.eq.s32.totalorder %s18, 0
      %p143 = por %p141, %p142
      %p144 = scmp.ne.s32.totalorder %s133, %s136
      %p145 = scmp.eq.s32.totalorder %s23, 1
      %p146 = por %p144, %p145
      %p147 = scmp.ne.s32.totalorder %s136, %s137
      %p148 = scmp.eq.s32.totalorder %s23, 0
      %p149 = por %p147, %p148
      %p150 = scmp.ne.s32.totalorder %s136, %s137
      %p151 = scmp.eq.s32.totalorder %s24, 1
      %p152 = por %p150, %p151
      %p154 = scmp.ne.s32.totalorder %s137, %s153
      %p155 = scmp.eq.s32.totalorder %s24, 0
      %p156 = por %p154, %p155
      %p157 = scmp.le.s32.totalorder 1, %s18
      %p158 = scmp.lt.s32.totalorder %s18, 3
      %p159 = pnand %p157, %p158
      %p160 = pneg %p159
      // Predicated region
      $region9: #{tpu_custom_call.1} parent=5 // pred_check
        _
      $region10: #{tpu_custom_call.1} parent=5 // pred_check_branch
        %162 = sbr.rel (%p159) target = $region12
      $region11: #{tpu_custom_call.1} parent=5 // pred_region
        %s163 = ssub.s32 %s18, 1
      $region12: #{tpu_custom_call.1} parent=5 // pred_fallthru
        _
      %p164 = scmp.lt.s32.totalorder %s18, 2
      // Predicated region
      $region13: #{tpu_custom_call.1} parent=5 // pred_check
        %p165 = pneg %p164
      $region14: #{tpu_custom_call.1} parent=5 // pred_check_branch
        %167 = sbr.rel (%p165) target = $region16
      $region15: #{tpu_custom_call.1} parent=5 // pred_region
        // Predicated region
        $region17: #{tpu_custom_call.1} parent=15 // pred_check
          %p168 = pneg %p59
        $region18: #{tpu_custom_call.1} parent=15 // pred_check_branch
          %170 = sbr.rel (%p168) target = $region20
        $region19: #{tpu_custom_call.1} parent=15 // pred_region
          %s171 = sand.u32 %s49, 1
          %s172 = scalar_lea.sflag [#allocation4], %s171
          %s173 = sand.u32 %s49, 1
          %s174 = smul.addr %s173, 8
          %s175 = scalar_lea.vmem [#allocation3], %s174
          %s177 = ssub.s32 128, 128
          %178 = vsyncadd %s172, %s177
          %s179 = sadd.s32 %s26, %s25
          %s180 = smul.addr %s179, 128
          %s181 = scalar_lea.hbm %s0, %s180
          %s183 = sshll.u32 %s175, 4
          %s184 = int_to_ptr.vmem [resolvable:$true] %s183
          %186 = dma.hbm_to_vmem [thread:$0]  %s181, 128, %s184, %s172
        $region20: #{tpu_custom_call.1} parent=15 // pred_fallthru
          _
        // Predicated region
        $region21: #{tpu_custom_call.1} parent=15 // pred_check
          %p187 = pneg %p87
        $region22: #{tpu_custom_call.1} parent=15 // pred_check_branch
          %189 = sbr.rel (%p187) target = $region24
        $region23: #{tpu_custom_call.1} parent=15 // pred_region
          %s190 = sand.u32 %s18, 1
          %s191 = scalar_lea.sflag [#allocation7], %s190
          %s192 = sand.u32 %s77, 1
          %s193 = smul.addr %s192, 8
          %s194 = scalar_lea.vmem [#allocation6], %s193
          %s196 = ssub.s32 128, 128
          %197 = vsyncadd %s191, %s196
          %s198 = sadd.s32 %s27, %s25
          %s199 = smul.addr %s198, 128
          %s200 = scalar_lea.hbm %s1, %s199
          %s202 = sshll.u32 %s194, 4
          %s203 = int_to_ptr.vmem [resolvable:$true] %s202
          %205 = dma.hbm_to_vmem [thread:$0]  %s200, 128, %s203, %s191
        $region24: #{tpu_custom_call.1} parent=15 // pred_fallthru
          _
        // Predicated region
        $region25: #{tpu_custom_call.1} parent=15 // pred_check
          %p206 = pneg %p115
        $region26: #{tpu_custom_call.1} parent=15 // pred_check_branch
          %208 = sbr.rel (%p206) target = $region28
        $region27: #{tpu_custom_call.1} parent=15 // pred_region
          %s209 = sand.u32 %s18, 1
          %s210 = scalar_lea.sflag [#allocation7], %s209
          %s211 = sand.u32 %s105, 1
          %s212 = smul.addr %s211, 8
          %s213 = scalar_lea.vmem [#allocation8], %s212
          %s215 = ssub.s32 128, 128
          %216 = vsyncadd %s210, %s215
          %s217 = sadd.s32 %s27, %s25
          %s218 = smul.addr %s217, 128
          %s219 = scalar_lea.hbm %s2, %s218
          %s221 = sshll.u32 %s213, 4
          %s222 = int_to_ptr.vmem [resolvable:$true] %s221
          %224 = dma.hbm_to_vmem [thread:$0]  %s219, 128, %s222, %s210
        $region28: #{tpu_custom_call.1} parent=15 // pred_fallthru
          _
      $region16: #{tpu_custom_call.1} parent=5 // pred_fallthru
        _
      %p225 = scmp.le.s32.totalorder 1, %s18
      %p226 = scmp.lt.s32.totalorder %s18, 3
      %p227 = pnand %p225, %p226
      %p228 = pneg %p227
      // Predicated region
      $region29: #{tpu_custom_call.1} parent=5 // pred_check
        _
      $region30: #{tpu_custom_call.1} parent=5 // pred_check_branch
        %230 = sbr.rel (%p227) target = $region32
      $region31: #{tpu_custom_call.1} parent=5 // pred_region
        %s231 = ssub.s32 %s18, 1
        %s232 = sand.u32 %s52, 1
        %s233 = scalar_lea.sflag [#allocation4], %s232
        %s234 = sand.u32 %s52, 1
        %s235 = smul.addr %s234, 8
        %s236 = scalar_lea.vmem [#allocation3], %s235
        // Predicated region
        $region33: #{tpu_custom_call.1} parent=31 // pred_check
          %p237 = pneg %p65
        $region34: #{tpu_custom_call.1} parent=31 // pred_check_branch
          %239 = sbr.rel (%p237) target = $region36
        $region35: #{tpu_custom_call.1} parent=31 // pred_region
          %240 = dma.done %s233, 128
        $region36: #{tpu_custom_call.1} parent=31 // pred_fallthru
          _
        %s241 = sand.u32 %s23, 1
        %s242 = scalar_lea.sflag [#allocation7], %s241
        %s243 = sand.u32 %s80, 1
        %s244 = smul.addr %s243, 8
        %s245 = scalar_lea.vmem [#allocation6], %s244
        // Predicated region
        $region37: #{tpu_custom_call.1} parent=31 // pred_check
          %p246 = pneg %p93
        $region38: #{tpu_custom_call.1} parent=31 // pred_check_branch
          %248 = sbr.rel (%p246) target = $region40
        $region39: #{tpu_custom_call.1} parent=31 // pred_region
          %249 = dma.done %s242, 128
        $region40: #{tpu_custom_call.1} parent=31 // pred_fallthru
          _
        %s250 = sand.u32 %s23, 1
        %s251 = scalar_lea.sflag [#allocation7], %s250
        %s252 = sand.u32 %s108, 1
        %s253 = smul.addr %s252, 8
        %s254 = scalar_lea.vmem [#allocation8], %s253
        // Predicated region
        $region41: #{tpu_custom_call.1} parent=31 // pred_check
          %p255 = pneg %p121
        $region42: #{tpu_custom_call.1} parent=31 // pred_check_branch
          %257 = sbr.rel (%p255) target = $region44
        $region43: #{tpu_custom_call.1} parent=31 // pred_region
          %258 = dma.done %s251, 128
        $region44: #{tpu_custom_call.1} parent=31 // pred_fallthru
          _
        %s259 = sand.u32 %s52, 1
        %s260 = scalar_lea.sflag [#allocation4], %s259
        %s261 = sand.u32 %s52, 1
        %s262 = smul.addr %s261, 8
        %s263 = scalar_lea.vmem [#allocation3], %s262
        %p264 = pneg %p65
        %p265 = pneg %p62
        %s266 = sand.u32 %s23, 1
        %s267 = scalar_lea.sflag [#allocation7], %s266
        %s268 = sand.u32 %s80, 1
        %s269 = smul.addr %s268, 8
        %s270 = scalar_lea.vmem [#allocation6], %s269
        %p271 = pneg %p93
        %p272 = pneg %p90
        %s273 = sand.u32 %s23, 1
        %s274 = scalar_lea.sflag [#allocation7], %s273
        %s275 = sand.u32 %s108, 1
        %s276 = smul.addr %s275, 8
        %s277 = scalar_lea.vmem [#allocation8], %s276
        %p278 = pneg %p121
        %p279 = pneg %p118
        %p280 = pneg %p149
        %p281 = pneg %p146
        %s282 = sand.u32 %s136, 1
        %s283 = scalar_lea.sflag [#allocation5], %s282
        %s284 = sand.u32 %s136, 1
        %s285 = smul.addr %s284, 8
        %s286 = scalar_lea.vmem [#allocation9], %s285
        %p287 = scmp.eq.s32.totalorder %s30, 0
        // Predicated region
        $region45: #{tpu_custom_call.1} parent=31 // pred_check
          %p288 = pneg %p287
        $region46: #{tpu_custom_call.1} parent=31 // pred_check_branch
          %290 = sbr.rel (%p288) target = $region48
        $region47: #{tpu_custom_call.1} parent=31 // pred_region
          %vm291 = vcmask 523264
          %292 = vst.msk [vmem:[#allocation2] sm:$0xff] %vm291, 0.0
        $region48: #{tpu_custom_call.1} parent=31 // pred_fallthru
          _
        %s293 = smul.u32 %s30, 8
        %s294 = sadd.s32 %s29, 1
        %s295 = smul.u32 %s294, 8
        %p296 = scmp.lt.s32.totalorder %s293, %s295
        // Predicated region
        $region49: #{tpu_custom_call.1} parent=31 // pred_check
          %p297 = pneg %p296
        $region50: #{tpu_custom_call.1} parent=31 // pred_check_branch
          %299 = sbr.rel (%p297) target = $region52
        $region51: #{tpu_custom_call.1} parent=31 // pred_region
          %v300 = vlaneseq
          %v301 = vshrl.u32 %v300, 7
          %s302 = smul.u32 %s29, 8
          %v303 = vstv %s302
          %v304 = vadd.s32 %v301, %v303
          %v305 = vlaneseq
          %v306 = vand.u32 %v305, 127
          %v307 = vstv %s293
          %v308 = vadd.s32 %v306, %v307
          %vm309 = vcmp.ge.s32.totalorder %v304, %v308
          %v310 = vld [vmem:[%s236] sm:$0xff]
          %v311 = vld [vmem:[%s245] sm:$0xff]
          %v312 = vld [vmem:[%s254] sm:$0xff]
          %vm313 = vcmask 261120
          %v315 = vsel %vm313, %v310, 0
          %v318 = vsel %vm313, %v311, 0
          %320 = vmatprep.subr.mxu0 0.0
          %321 = vmatpush1.xpose.msra.mxu0 %v318
          %322 = vmatprep.subr.mxu0 0.0
          %323 = vmatpush1.xpose.msra.mxu0 0.0
          %324 = vmatprep.subr.mxu0 0.0
          %325 = vmatpush1.xpose.msra.mxu0 0.0
          %326 = vmatprep.subr.mxu0 0.0
          %327 = vmatpush1.xpose.msra.mxu0 0.0
          %328 = vmatprep.subr.mxu0 0.0
          %329 = vmatpush1.xpose.msra.mxu0 0.0
          %330 = vmatprep.subr.mxu0 0.0
          %331 = vmatpush1.xpose.msra.mxu0 0.0
          %332 = vmatprep.subr.mxu0 0.0
          %333 = vmatpush1.xpose.msra.mxu0 0.0
          %334 = vmatprep.subr.mxu0 0.0
          %335 = vmatpush1.xpose.msra.mxu0 0.0
          %336 = vmatprep.subr.mxu0 0.0
          %337 = vmatpush1.xpose.msra.mxu0 0.0
          %338 = vmatprep.subr.mxu0 0.0
          %339 = vmatpush1.xpose.msra.mxu0 0.0
          %340 = vmatprep.subr.mxu0 0.0
          %341 = vmatpush1.xpose.msra.mxu0 0.0
          %342 = vmatprep.subr.mxu0 0.0
          %343 = vmatpush1.xpose.msra.mxu0 0.0
          %344 = vmatprep.subr.mxu0 0.0
          %345 = vmatpush1.xpose.msra.mxu0 0.0
          %346 = vmatprep.subr.mxu0 0.0
          %347 = vmatpush1.xpose.msra.mxu0 0.0
          %348 = vmatprep.subr.mxu0 0.0
          %349 = vmatpush1.xpose.msra.mxu0 0.0
          %350 = vmatprep.subr.mxu0 0.0
          %351 = vmatpush1.xpose.msra.mxu0 0.0
          %352 = vmatprep.subr.mxu0 0.0
          %353 = vmatpush1.xpose.msra.mxu0 0.0
          %354 = vmatprep.subr.mxu0 0.0
          %355 = vmatpush1.xpose.msra.mxu0 0.0
          %356 = vmatprep.subr.mxu0 0.0
          %357 = vmatpush1.xpose.msra.mxu0 0.0
          %358 = vmatprep.subr.mxu0 0.0
          %359 = vmatpush1.xpose.msra.mxu0 0.0
          %360 = vmatprep.subr.mxu0 0.0
          %361 = vmatpush1.xpose.msra.mxu0 0.0
          %362 = vmatprep.subr.mxu0 0.0
          %363 = vmatpush1.xpose.msra.mxu0 0.0
          %364 = vmatprep.subr.mxu0 0.0
          %365 = vmatpush1.xpose.msra.mxu0 0.0
          %366 = vmatprep.subr.mxu0 0.0
          %367 = vmatpush1.xpose.msra.mxu0 0.0
          %368 = vmatprep.subr.mxu0 0.0
          %369 = vmatpush1.xpose.msra.mxu0 0.0
          %370 = vmatprep.subr.mxu0 0.0
          %371 = vmatpush1.xpose.msra.mxu0 0.0
          %372 = vmatprep.subr.mxu0 0.0
          %373 = vmatpush1.xpose.msra.mxu0 0.0
          %374 = vmatprep.subr.mxu0 0.0
          %375 = vmatpush1.xpose.msra.mxu0 0.0
          %376 = vmatprep.subr.mxu0 0.0
          %377 = vmatpush1.xpose.msra.mxu0 0.0
          %378 = vmatprep.subr.mxu0 0.0
          %379 = vmatpush1.xpose.msra.mxu0 0.0
          %380 = vmatprep.subr.mxu0 0.0
          %381 = vmatpush1.xpose.msra.mxu0 0.0
          %382 = vmatprep.subr.mxu0 0.0
          %383 = vmatpush1.xpose.msra.mxu0 0.0
          %384 = vmatprep.mubr.f32.mxu0 0.0
          %385 = vmatmul.mubr.f32.gmra.mrb[0].mxu0 %v315
          %v386 = vpop.f32.mrb[0].mxu0
          %v387 = vadd.f32 0.0, %v386
          %v388 = vpop.f32.mrb[0].mxu0
          %389 = vdwg.mxu0
          %v390 = vmul.f32 %v387, 0.17677669
          %v391 = vxor.u32 %v390, 2147483648
          %v392 = vmul.f32 %v391, 1.442695
          %v393 = vpow.pop %v392
          %v394 = vadd.f32 %v393, 1.0
          %v395 = vrcp.pop %v394
          %v396 = vmul.f32 1.0, %v395
          %v397 = vmul.f32 %v390, %v396
          %v398 = vmul.f32 %v397, 0.125
          %v399 = vsel %vm309, %v398, 0.0
          %vm400 = vcmask 64512
          %v402 = vsel %vm400, %v399, 0
          %404 = vmatprep.subr.mxu0 0.0
          %405 = vmatpush1.msra.mxu0 %v312
          %406 = vmatprep.subr.mxu0 0.0
          %407 = vmatpush1.msra.mxu0 0.0
          %408 = vmatprep.subr.mxu0 0.0
          %409 = vmatpush1.msra.mxu0 0.0
          %410 = vmatprep.subr.mxu0 0.0
          %411 = vmatpush1.msra.mxu0 0.0
          %412 = vmatprep.subr.mxu0 0.0
          %413 = vmatpush1.msra.mxu0 0.0
          %414 = vmatprep.subr.mxu0 0.0
          %415 = vmatpush1.msra.mxu0 0.0
          %416 = vmatprep.subr.mxu0 0.0
          %417 = vmatpush1.msra.mxu0 0.0
          %418 = vmatprep.subr.mxu0 0.0
          %419 = vmatpush1.msra.mxu0 0.0
          %420 = vmatprep.subr.mxu0 0.0
          %421 = vmatpush1.msra.mxu0 0.0
          %422 = vmatprep.subr.mxu0 0.0
          %423 = vmatpush1.msra.mxu0 0.0
          %424 = vmatprep.subr.mxu0 0.0
          %425 = vmatpush1.msra.mxu0 0.0
          %426 = vmatprep.subr.mxu0 0.0
          %427 = vmatpush1.msra.mxu0 0.0
          %428 = vmatprep.subr.mxu0 0.0
          %429 = vmatpush1.msra.mxu0 0.0
          %430 = vmatprep.subr.mxu0 0.0
          %431 = vmatpush1.msra.mxu0 0.0
          %432 = vmatprep.subr.mxu0 0.0
          %433 = vmatpush1.msra.mxu0 0.0
          %434 = vmatprep.subr.mxu0 0.0
          %435 = vmatpush1.msra.mxu0 0.0
          %436 = vmatprep.subr.mxu0 0.0
          %437 = vmatpush1.msra.mxu0 0.0
          %438 = vmatprep.subr.mxu0 0.0
          %439 = vmatpush1.msra.mxu0 0.0
          %440 = vmatprep.subr.mxu0 0.0
          %441 = vmatpush1.msra.mxu0 0.0
          %442 = vmatprep.subr.mxu0 0.0
          %443 = vmatpush1.msra.mxu0 0.0
          %444 = vmatprep.subr.mxu0 0.0
          %445 = vmatpush1.msra.mxu0 0.0
          %446 = vmatprep.subr.mxu0 0.0
          %447 = vmatpush1.msra.mxu0 0.0
          %448 = vmatprep.subr.mxu0 0.0
          %449 = vmatpush1.msra.mxu0 0.0
          %450 = vmatprep.subr.mxu0 0.0
          %451 = vmatpush1.msra.mxu0 0.0
          %452 = vmatprep.subr.mxu0 0.0
          %453 = vmatpush1.msra.mxu0 0.0
          %454 = vmatprep.subr.mxu0 0.0
          %455 = vmatpush1.msra.mxu0 0.0
          %456 = vmatprep.subr.mxu0 0.0
          %457 = vmatpush1.msra.mxu0 0.0
          %458 = vmatprep.subr.mxu0 0.0
          %459 = vmatpush1.msra.mxu0 0.0
          %460 = vmatprep.subr.mxu0 0.0
          %461 = vmatpush1.msra.mxu0 0.0
          %462 = vmatprep.subr.mxu0 0.0
          %463 = vmatpush1.msra.mxu0 0.0
          %464 = vmatprep.subr.mxu0 0.0
          %465 = vmatpush1.msra.mxu0 0.0
          %466 = vmatprep.subr.mxu0 0.0
          %467 = vmatpush1.msra.mxu0 0.0
          %468 = vmatprep.mubr.f32.mxu0 0.0
          %469 = vmatmul.mubr.f32.gmra.mrb[0].mxu0 %v402
          %v470 = vpop.f32.mrb[0].mxu0
          %v471 = vadd.f32 0.0, %v470
          %v472 = vpop.f32.mrb[0].mxu0
          %473 = vdwg.mxu0
          %474 = vrot.lane.b32.xlu0 %v310, 96
          %v475 = vpop.permute.xlu0 %474
          %476 = vrot.lane.b32.xlu0 %v311, 96
          %v477 = vpop.permute.xlu0 %476
          %v478 = vsel %vm313, %v475, 0
          %v480 = vsel %vm313, %v477, 0
          %482 = vmatprep.subr.mxu0 0.0
          %483 = vmatpush1.xpose.msra.mxu0 %v480
          %484 = vmatprep.subr.mxu0 0.0
          %485 = vmatpush1.xpose.msra.mxu0 0.0
          %486 = vmatprep.subr.mxu0 0.0
          %487 = vmatpush1.xpose.msra.mxu0 0.0
          %488 = vmatprep.subr.mxu0 0.0
          %489 = vmatpush1.xpose.msra.mxu0 0.0
          %490 = vmatprep.subr.mxu0 0.0
          %491 = vmatpush1.xpose.msra.mxu0 0.0
          %492 = vmatprep.subr.mxu0 0.0
          %493 = vmatpush1.xpose.msra.mxu0 0.0
          %494 = vmatprep.subr.mxu0 0.0
          %495 = vmatpush1.xpose.msra.mxu0 0.0
          %496 = vmatprep.subr.mxu0 0.0
          %497 = vmatpush1.xpose.msra.mxu0 0.0
          %498 = vmatprep.subr.mxu0 0.0
          %499 = vmatpush1.xpose.msra.mxu0 0.0
          %500 = vmatprep.subr.mxu0 0.0
          %501 = vmatpush1.xpose.msra.mxu0 0.0
          %502 = vmatprep.subr.mxu0 0.0
          %503 = vmatpush1.xpose.msra.mxu0 0.0
          %504 = vmatprep.subr.mxu0 0.0
          %505 = vmatpush1.xpose.msra.mxu0 0.0
          %506 = vmatprep.subr.mxu0 0.0
          %507 = vmatpush1.xpose.msra.mxu0 0.0
          %508 = vmatprep.subr.mxu0 0.0
          %509 = vmatpush1.xpose.msra.mxu0 0.0
          %510 = vmatprep.subr.mxu0 0.0
          %511 = vmatpush1.xpose.msra.mxu0 0.0
          %512 = vmatprep.subr.mxu0 0.0
          %513 = vmatpush1.xpose.msra.mxu0 0.0
          %514 = vmatprep.subr.mxu0 0.0
          %515 = vmatpush1.xpose.msra.mxu0 0.0
          %516 = vmatprep.subr.mxu0 0.0
          %517 = vmatpush1.xpose.msra.mxu0 0.0
          %518 = vmatprep.subr.mxu0 0.0
          %519 = vmatpush1.xpose.msra.mxu0 0.0
          %520 = vmatprep.subr.mxu0 0.0
          %521 = vmatpush1.xpose.msra.mxu0 0.0
          %522 = vmatprep.subr.mxu0 0.0
          %523 = vmatpush1.xpose.msra.mxu0 0.0
          %524 = vmatprep.subr.mxu0 0.0
          %525 = vmatpush1.xpose.msra.mxu0 0.0
          %526 = vmatprep.subr.mxu0 0.0
          %527 = vmatpush1.xpose.msra.mxu0 0.0
          %528 = vmatprep.subr.mxu0 0.0
          %529 = vmatpush1.xpose.msra.mxu0 0.0
          %530 = vmatprep.subr.mxu0 0.0
          %531 = vmatpush1.xpose.msra.mxu0 0.0
          %532 = vmatprep.subr.mxu0 0.0
          %533 = vmatpush1.xpose.msra.mxu0 0.0
          %534 = vmatprep.subr.mxu0 0.0
          %535 = vmatpush1.xpose.msra.mxu0 0.0
          %536 = vmatprep.subr.mxu0 0.0
          %537 = vmatpush1.xpose.msra.mxu0 0.0
          %538 = vmatprep.subr.mxu0 0.0
          %539 = vmatpush1.xpose.msra.mxu0 0.0
          %540 = vmatprep.subr.mxu0 0.0
          %541 = vmatpush1.xpose.msra.mxu0 0.0
          %542 = vmatprep.subr.mxu0 0.0
          %543 = vmatpush1.xpose.msra.mxu0 0.0
          %544 = vmatprep.subr.mxu0 0.0
          %545 = vmatpush1.xpose.msra.mxu0 0.0
          %546 = vmatprep.mubr.f32.mxu0 0.0
          %547 = vmatmul.mubr.f32.gmra.mrb[0].mxu0 %v478
          %v548 = vpop.f32.mrb[0].mxu0
          %v549 = vadd.f32 0.0, %v548
          %v550 = vpop.f32.mrb[0].mxu0
          %551 = vdwg.mxu0
          %v552 = vmul.f32 %v549, 0.17677669
          %v553 = vxor.u32 %v552, 2147483648
          %v554 = vmul.f32 %v553, 1.442695
          %v555 = vpow.pop %v554
          %v556 = vadd.f32 %v555, 1.0
          %v557 = vrcp.pop %v556
          %v558 = vmul.f32 1.0, %v557
          %v559 = vmul.f32 %v552, %v558
          %v560 = vmul.f32 %v559, 0.125
          %v561 = vsel %vm309, %v560, 0.0
          %563 = vrot.lane.b32.xlu0 %v312, 96
          %v564 = vpop.permute.xlu0 %563
          %v567 = vsel %vm400, %v561, 0
          %569 = vmatprep.subr.mxu0 0.0
          %570 = vmatpush1.msra.mxu0 %v564
          %571 = vmatprep.subr.mxu0 0.0
          %572 = vmatpush1.msra.mxu0 0.0
          %573 = vmatprep.subr.mxu0 0.0
          %574 = vmatpush1.msra.mxu0 0.0
          %575 = vmatprep.subr.mxu0 0.0
          %576 = vmatpush1.msra.mxu0 0.0
          %577 = vmatprep.subr.mxu0 0.0
          %578 = vmatpush1.msra.mxu0 0.0
          %579 = vmatprep.subr.mxu0 0.0
          %580 = vmatpush1.msra.mxu0 0.0
          %581 = vmatprep.subr.mxu0 0.0
          %582 = vmatpush1.msra.mxu0 0.0
          %583 = vmatprep.subr.mxu0 0.0
          %584 = vmatpush1.msra.mxu0 0.0
          %585 = vmatprep.subr.mxu0 0.0
          %586 = vmatpush1.msra.mxu0 0.0
          %587 = vmatprep.subr.mxu0 0.0
          %588 = vmatpush1.msra.mxu0 0.0
          %589 = vmatprep.subr.mxu0 0.0
          %590 = vmatpush1.msra.mxu0 0.0
          %591 = vmatprep.subr.mxu0 0.0
          %592 = vmatpush1.msra.mxu0 0.0
          %593 = vmatprep.subr.mxu0 0.0
          %594 = vmatpush1.msra.mxu0 0.0
          %595 = vmatprep.subr.mxu0 0.0
          %596 = vmatpush1.msra.mxu0 0.0
          %597 = vmatprep.subr.mxu0 0.0
          %598 = vmatpush1.msra.mxu0 0.0
          %599 = vmatprep.subr.mxu0 0.0
          %600 = vmatpush1.msra.mxu0 0.0
          %601 = vmatprep.subr.mxu0 0.0
          %602 = vmatpush1.msra.mxu0 0.0
          %603 = vmatprep.subr.mxu0 0.0
          %604 = vmatpush1.msra.mxu0 0.0
          %605 = vmatprep.subr.mxu0 0.0
          %606 = vmatpush1.msra.mxu0 0.0
          %607 = vmatprep.subr.mxu0 0.0
          %608 = vmatpush1.msra.mxu0 0.0
          %609 = vmatprep.subr.mxu0 0.0
          %610 = vmatpush1.msra.mxu0 0.0
          %611 = vmatprep.subr.mxu0 0.0
          %612 = vmatpush1.msra.mxu0 0.0
          %613 = vmatprep.subr.mxu0 0.0
          %614 = vmatpush1.msra.mxu0 0.0
          %615 = vmatprep.subr.mxu0 0.0
          %616 = vmatpush1.msra.mxu0 0.0
          %617 = vmatprep.subr.mxu0 0.0
          %618 = vmatpush1.msra.mxu0 0.0
          %619 = vmatprep.subr.mxu0 0.0
          %620 = vmatpush1.msra.mxu0 0.0
          %621 = vmatprep.subr.mxu0 0.0
          %622 = vmatpush1.msra.mxu0 0.0
          %623 = vmatprep.subr.mxu0 0.0
          %624 = vmatpush1.msra.mxu0 0.0
          %625 = vmatprep.subr.mxu0 0.0
          %626 = vmatpush1.msra.mxu0 0.0
          %627 = vmatprep.subr.mxu0 0.0
          %628 = vmatpush1.msra.mxu0 0.0
          %629 = vmatprep.subr.mxu0 0.0
          %630 = vmatpush1.msra.mxu0 0.0
          %631 = vmatprep.subr.mxu0 0.0
          %632 = vmatpush1.msra.mxu0 0.0
          %633 = vmatprep.mubr.f32.mxu0 0.0
          %634 = vmatmul.mubr.f32.gmra.mrb[0].mxu0 %v567
          %v635 = vpop.f32.mrb[0].mxu0
          %v636 = vadd.f32 0.0, %v635
          %v637 = vpop.f32.mrb[0].mxu0
          %638 = vdwg.mxu0
          %v639 = vld [vmem:[#allocation2] sm:$0xff]
          %641 = vrot.lane.b32.xlu0 %v636, 32
          %v642 = vpop.permute.xlu0 %641
          %v644 = vsel %vm313, %v471, %v642
          %v645 = vadd.f32 %v639, %v644
          %vm646 = vcmask 523264
          %647 = vst.msk [vmem:[#allocation2] sm:$0xff] %vm646, %v645
        $region52: #{tpu_custom_call.1} parent=31 // pred_fallthru
          _
        // Predicated region
        $region53: #{tpu_custom_call.1} parent=31 // pred_check
          %p648 = pneg %p287
        $region54: #{tpu_custom_call.1} parent=31 // pred_check_branch
          %650 = sbr.rel (%p648) target = $region56
        $region55: #{tpu_custom_call.1} parent=31 // pred_region
          %v651 = vld [vmem:[#allocation2] sm:$0xff]
          %vm652 = vcmask 523264
          %653 = vst.msk [vmem:[%s286] sm:$0xff] %vm652, %v651
        $region56: #{tpu_custom_call.1} parent=31 // pred_fallthru
          _
        %s654 = sand.u32 %s136, 1
        %s655 = scalar_lea.sflag [#allocation5], %s654
        %s656 = sand.u32 %s136, 1
        %s657 = smul.addr %s656, 8
        %s658 = scalar_lea.vmem [#allocation9], %s657
        // Predicated region
        $region57: #{tpu_custom_call.1} parent=31 // pred_check
          %p659 = pneg %p146
        $region58: #{tpu_custom_call.1} parent=31 // pred_check_branch
          %661 = sbr.rel (%p659) target = $region60
        $region59: #{tpu_custom_call.1} parent=31 // pred_region
          %s663 = ssub.s32 128, 128
          %664 = vsyncadd %s655, %s663
          %s665 = sadd.s32 %s29, %s28
          %s666 = smul.addr %s665, 128
          %s667 = scalar_lea.hbm %s3, %s666
          %s669 = sshll.u32 %s658, 4
          %s670 = int_to_ptr.vmem [resolvable:$true] %s669
          %672 = dma.vmem_to_hbm [thread:$0]  %s670, 128, %s667, %s655
        $region60: #{tpu_custom_call.1} parent=31 // pred_fallthru
          _
      $region32: #{tpu_custom_call.1} parent=5 // pred_fallthru
        _
      %p673 = scmp.le.s32.totalorder 2, %s18
      // Predicated region
      $region61: #{tpu_custom_call.1} parent=5 // pred_check
        %p674 = pneg %p673
      $region62: #{tpu_custom_call.1} parent=5 // pred_check_branch
        %676 = sbr.rel (%p674) target = $region64
      $region63: #{tpu_custom_call.1} parent=5 // pred_region
        %s677 = ssub.s32 %s18, 2
        // Predicated region
        $region65: #{tpu_custom_call.1} parent=63 // pred_check
          %p678 = pneg %p152
        $region66: #{tpu_custom_call.1} parent=63 // pred_check_branch
          %680 = sbr.rel (%p678) target = $region68
        $region67: #{tpu_custom_call.1} parent=63 // pred_region
          %s681 = sand.u32 %s137, 1
          %s682 = scalar_lea.sflag [#allocation5], %s681
          %s683 = sand.u32 %s137, 1
          %s684 = smul.addr %s683, 8
          %s685 = scalar_lea.vmem [#allocation9], %s684
          %686 = dma.done %s682, 128
        $region68: #{tpu_custom_call.1} parent=63 // pred_fallthru
          _
      $region64: #{tpu_custom_call.1} parent=5 // pred_fallthru
        _
    $region6: #{tpu_custom_call.1} parent=1 // loop_footer
      %s22 = sadd.s32 1, %s18
    $region7: #{tpu_custom_call.1} parent=1 // loop_footer_branch
      %17 = sbr.rel target = $region3
    $region8: #{tpu_custom_call.1} parent=1 // loop_exit
      _
    %687 = vsyncpa [#allocation4], 1
    %s688 = scalar_lea.sflag [#allocation4], 1
    %689 = vsyncpa %s688, 1
    %690 = vsyncpa [#allocation7], 1
    %s691 = scalar_lea.sflag [#allocation7], 1
    %692 = vsyncpa %s691, 1
    %693 = vsyncpa [#allocation5], 1
    %s694 = scalar_lea.sflag [#allocation5], 1
    %695 = vsyncpa %s694, 1

</llo_original>
